<compile_context>
chip_gen: v6e
topology: v6e:2x2x1
jax: 0.10.0
libtpu: 0.0.40
codegen_flags: <defaults>
</compile_context>

<pallas_src>
import functools

import jax
import jax.numpy as jnp
from jax.experimental import pallas as pl
from jax.experimental.pallas import tpu as pltpu


def _mlp_kernel(xT_ref, w1_ref, b1_ref, w2_ref, b2_ref, w3_ref, b3_ref, o_ref):
    """Fused MLP with batch on the lane axis.

    xT_ref: (in, tm) bf16     w*: (out_f, in_f) bf16     b*: (out_f, 1) f32
    o_ref:  (out, tm) f32
    """
    cdt = w1_ref.dtype
    h1 = jnp.dot(w1_ref[...], xT_ref[...], preferred_element_type=jnp.float32)
    h1 = jnp.maximum(h1 + b1_ref[...], 0.0)                    # (h1, tm) f32
    h2 = jnp.dot(w2_ref[...], h1.astype(cdt), preferred_element_type=jnp.float32)
    h2 = jnp.maximum(h2 + b2_ref[...], 0.0)                    # (h2, tm) f32
    out = jnp.dot(w3_ref[...], h2.astype(cdt), preferred_element_type=jnp.float32)
    o_ref[...] = (out + b3_ref[...]).astype(o_ref.dtype)       # (out, tm) lane-dense


def pack_params(p, compute_dtype=jnp.bfloat16):
    """One-time pack: keep PyTorch weight layout (w: [out, in]) but cast to the
    compute dtype; biases become f32 columns [out, 1] (broadcast along lanes).
    Call ONCE, outside the forward path."""
    return {
        "w1": jnp.asarray(p["w1"], compute_dtype),             # [h1, in]
        "b1": jnp.asarray(p["b1"], jnp.float32)[:, None],      # [h1, 1]
        "w2": jnp.asarray(p["w2"], compute_dtype),             # [h2, h1]
        "b2": jnp.asarray(p["b2"], jnp.float32)[:, None],      # [h2, 1]
        "w3": jnp.asarray(p["w3"], compute_dtype),             # [out, h2]
        "b3": jnp.asarray(p["b3"], jnp.float32)[:, None],      # [out, 1]
    }


@functools.partial(jax.jit, static_argnames=("block_rows",))
def neural_net_forward(x, packed, *, block_rows=4096):
    """Forward pass of NeuralNetModule on pre-packed params. Returns squeeze()d output."""
    B, in_size = x.shape
    h1_size = packed["w1"].shape[0]
    h2_size = packed["w2"].shape[0]
    out_size = packed["w3"].shape[0]

    # Single fused transpose+cast in the wrapper: batch goes on the lane axis.
    xT = jnp.asarray(x, packed["w1"].dtype).T                  # (in, B) bf16

    # Batch (lane) tile: full batch if small, else a 128-aligned tile.
    if B <= block_rows:
        tm = B
    else:
        tm = max(128, block_rows - (block_rows % 128))
    num_tiles = pl.cdiv(B, tm)

    resident = lambda i: (0, 0)   # weights/biases: same block every grid step
    col_tile = lambda i: (0, i)   # activations/output: march along the batch lanes

    x_kwargs = {}
    if num_tiles >= 3:
        # Deeper pipelining on the only recurring per-step DMA (cheap in VMEM).
        x_kwargs["pipeline_mode"] = pl.Buffered(3)

    in_specs = [
        pl.BlockSpec((in_size, tm), col_tile, **x_kwargs),     # x^T tile
        pl.BlockSpec((h1_size, in_size), resident),            # w1
        pl.BlockSpec((h1_size, 1), resident),                  # b1
        pl.BlockSpec((h2_size, h1_size), resident),            # w2
        pl.BlockSpec((h2_size, 1), resident),                  # b2
        pl.BlockSpec((out_size, h2_size), resident),           # w3
        pl.BlockSpec((out_size, 1), resident),                 # b3
    ]
    out_specs = pl.BlockSpec((out_size, tm), col_tile)

    itemsize = jnp.dtype(packed["w1"].dtype).itemsize
    flops = 2 * B * (in_size * h1_size + h1_size * h2_size + h2_size * out_size)
    bytes_accessed = (
        itemsize * B * in_size
        + itemsize * (in_size * h1_size + h1_size * h2_size + h2_size * out_size)
        + 4 * (h1_size + h2_size + out_size)
        + 4 * B * out_size)

    out_cb = pl.pallas_call(
        _mlp_kernel,
        out_shape=jax.ShapeDtypeStruct((out_size, B), jnp.float32),
        grid=(num_tiles,),
        in_specs=in_specs,
        out_specs=out_specs,
        compiler_params=pltpu.CompilerParams(
            dimension_semantics=("parallel",),      # shard batch steps across TCs (v7x)
            vmem_limit_bytes=32 * 1024 * 1024,      # headroom for large tm; fits v7x/v5e
        ),
        cost_estimate=pl.CostEstimate(
            flops=flops, transcendentals=0, bytes_accessed=bytes_accessed),
    )(xT, packed["w1"], packed["b1"], packed["w2"], packed["b2"],
      packed["w3"], packed["b3"])

    # (out, B) -> (B, out), then match PyTorch .squeeze() (drop all size-1 dims).
    # For out_size == 1 this is just a metadata reshape (no real transpose).
    return jnp.squeeze(out_cb.T)


def init_params(key, input_size, h1_size, h2_size, output_size):
    """Deterministic init mimicking nn.Linear's U(-1/sqrt(fan_in), 1/sqrt(fan_in)),
    stored in PyTorch convention (w: [out, in], b: [out])."""
    ks = jax.random.split(key, 6)

    def lin_init(kw, kb, fan_in, fan_out):
        bound = 1.0 / jnp.sqrt(fan_in)
        w = jax.random.uniform(kw, (fan_out, fan_in), jnp.float32, -bound, bound)
        b = jax.random.uniform(kb, (fan_out,), jnp.float32, -bound, bound)
        return w, b

    w1, b1 = lin_init(ks[0], ks[1], input_size, h1_size)
    w2, b2 = lin_init(ks[2], ks[3], h1_size, h2_size)
    w3, b3 = lin_init(ks[4], ks[5], h2_size, output_size)
    return {"w1": w1, "b1": b1, "w2": w2, "b2": b2, "w3": w3, "b3": b3}


def reference_forward(x, p):
    """Pure-f32 JAX reference with PyTorch semantics."""
    h1 = jnp.maximum(x @ p["w1"].T + p["b1"], 0.0)
    h2 = jnp.maximum(h1 @ p["w2"].T + p["b2"], 0.0)
    out = h2 @ p["w3"].T + p["b3"]
    return jnp.squeeze(out)


if __name__ == "__main__":
    # Shapes consistent with the module: batch=8, input=32, h1=64, h2=32, out=1
    batch, input_size, h1_size, h2_size, output_size = 8, 32, 64, 32, 1

    key = jax.random.PRNGKey(0)
    k_x, k_p, k_x2, k_x3 = jax.random.split(key, 4)
    x = jax.random.normal(k_x, (batch, input_size), jnp.float32)
    params = init_params(k_p, input_size, h1_size, h2_size, output_size)
    packed = pack_params(params)   # one-time layout conversion + bf16 cast

    # Tolerances reflect bf16 inputs with f32 accumulation vs. an f32 reference.
    TOL = dict(atol=3e-2, rtol=3e-2)

    out = jax.block_until_ready(neural_net_forward(x, packed))
    ref = reference_forward(x, params)
    assert out.shape == (batch,), f"unexpected output shape {out.shape}"
    assert jnp.allclose(out, ref, **TOL), "mismatch vs JAX reference (small batch)"

    # Multi-tile pipelined path: 4 grid steps of 256 lanes, Buffered(3) active.
    x_big = jax.random.normal(k_x2, (1024, input_size), jnp.float32)
    out_big = jax.block_until_ready(neural_net_forward(x_big, packed, block_rows=256))
    ref_big = reference_forward(x_big, params)
    assert out_big.shape == (1024,), f"unexpected output shape {out_big.shape}"
    assert jnp.allclose(out_big, ref_big, **TOL), "mismatch (multi-tile path)"

    # Ragged tail tile (1000 = 7*128 + 104): padded lanes are dropped on store.
    x_rag = jax.random.normal(k_x3, (1000, input_size), jnp.float32)
    out_rag = jax.block_until_ready(neural_net_forward(x_rag, packed, block_rows=128))
    ref_rag = reference_forward(x_rag, params)
    assert out_rag.shape == (1000,), f"unexpected output shape {out_rag.shape}"
    assert jnp.allclose(out_rag, ref_rag, **TOL), "mismatch (ragged tail tile)"

    print("KERNEL_OK")
</pallas_src>

<mosaic_0001>
module attributes {stable_mosaic.version = 11 : i64} {
  func.func @_mlp_kernel(%arg0: i32, %arg1: memref<32x8xbf16, #tpu.memory_space<vmem>>, %arg2: memref<64x32xbf16, #tpu.memory_space<vmem>>, %arg3: memref<64x1xf32, #tpu.memory_space<vmem>>, %arg4: memref<32x64xbf16, #tpu.memory_space<vmem>>, %arg5: memref<32x1xf32, #tpu.memory_space<vmem>>, %arg6: memref<1x32xbf16, #tpu.memory_space<vmem>>, %arg7: memref<1x1xf32, #tpu.memory_space<vmem>>, %arg8: memref<1x8xf32, #tpu.memory_space<vmem>>) attributes {dimension_semantics = [#tpu.dimension_semantics<parallel>], iteration_bounds = array<i64: 1>, scalar_prefetch = 0 : i64, scratch_operands = 0 : i64, tpu.core_type = #tpu.core_type<tc>, window_params = [{transform_indices = @transform_0, window_bounds = array<i64: 32, 8>}, {pipeline_mode = #tpu.pipeline_mode<synchronous>, transform_indices = @transform_1, window_bounds = array<i64: 64, 32>}, {pipeline_mode = #tpu.pipeline_mode<synchronous>, transform_indices = @transform_2, window_bounds = array<i64: 64, 1>}, {pipeline_mode = #tpu.pipeline_mode<synchronous>, transform_indices = @transform_3, window_bounds = array<i64: 32, 64>}, {pipeline_mode = #tpu.pipeline_mode<synchronous>, transform_indices = @transform_4, window_bounds = array<i64: 32, 1>}, {pipeline_mode = #tpu.pipeline_mode<synchronous>, transform_indices = @transform_5, window_bounds = array<i64: 1, 32>}, {pipeline_mode = #tpu.pipeline_mode<synchronous>, transform_indices = @transform_6, window_bounds = array<i64: 1, 1>}, {transform_indices = @transform_7, window_bounds = array<i64: 1, 8>}]} {
    %c0 = arith.constant 0 : index
    %c0_0 = arith.constant 0 : index
    %0 = vector.load %arg2[%c0, %c0_0] : memref<64x32xbf16, #tpu.memory_space<vmem>>, vector<64x32xbf16>
    %c0_1 = arith.constant 0 : index
    %c0_2 = arith.constant 0 : index
    %1 = vector.load %arg1[%c0_1, %c0_2] : memref<32x8xbf16, #tpu.memory_space<vmem>>, vector<32x8xbf16>
    %cst = arith.constant dense<0.000000e+00> : vector<64x8xf32>
    %2 = tpu.matmul %0, %1, %cst {dimension_numbers = #tpu.dot_dimension_numbers<[1], [0], [0], [1], [0, 0, 1, 1], [], []>} : vector<64x32xbf16>, vector<32x8xbf16>, vector<64x8xf32> -> vector<64x8xf32>
    %c0_3 = arith.constant 0 : index
    %c0_4 = arith.constant 0 : index
    %3 = vector.load %arg3[%c0_3, %c0_4] : memref<64x1xf32, #tpu.memory_space<vmem>>, vector<64x1xf32>
    %4 = vector.broadcast %3 : vector<64x1xf32> to vector<64x8xf32>
    %5 = arith.addf %2, %4 : vector<64x8xf32>
    %cst_5 = arith.constant 0.000000e+00 : f32
    %6 = vector.broadcast %cst_5 : f32 to vector<64x8xf32>
    %7 = arith.maximumf %5, %6 : vector<64x8xf32>
    %c0_6 = arith.constant 0 : index
    %c0_7 = arith.constant 0 : index
    %8 = vector.load %arg4[%c0_6, %c0_7] : memref<32x64xbf16, #tpu.memory_space<vmem>>, vector<32x64xbf16>
    %9 = arith.truncf %7 : vector<64x8xf32> to vector<64x8xbf16>
    %cst_8 = arith.constant dense<0.000000e+00> : vector<32x8xf32>
    %10 = tpu.matmul %8, %9, %cst_8 {dimension_numbers = #tpu.dot_dimension_numbers<[1], [0], [0], [1], [0, 0, 1, 1], [], []>} : vector<32x64xbf16>, vector<64x8xbf16>, vector<32x8xf32> -> vector<32x8xf32>
    %c0_9 = arith.constant 0 : index
    %c0_10 = arith.constant 0 : index
    %11 = vector.load %arg5[%c0_9, %c0_10] : memref<32x1xf32, #tpu.memory_space<vmem>>, vector<32x1xf32>
    %12 = vector.broadcast %11 : vector<32x1xf32> to vector<32x8xf32>
    %13 = arith.addf %10, %12 : vector<32x8xf32>
    %cst_11 = arith.constant 0.000000e+00 : f32
    %14 = vector.broadcast %cst_11 : f32 to vector<32x8xf32>
    %15 = arith.maximumf %13, %14 : vector<32x8xf32>
    %c0_12 = arith.constant 0 : index
    %c0_13 = arith.constant 0 : index
    %16 = vector.load %arg6[%c0_12, %c0_13] : memref<1x32xbf16, #tpu.memory_space<vmem>>, vector<1x32xbf16>
    %17 = arith.truncf %15 : vector<32x8xf32> to vector<32x8xbf16>
    %cst_14 = arith.constant dense<0.000000e+00> : vector<1x8xf32>
    %18 = tpu.matmul %16, %17, %cst_14 {dimension_numbers = #tpu.dot_dimension_numbers<[1], [0], [0], [1], [0, 0, 1, 1], [], []>} : vector<1x32xbf16>, vector<32x8xbf16>, vector<1x8xf32> -> vector<1x8xf32>
    %c0_15 = arith.constant 0 : index
    %c0_16 = arith.constant 0 : index
    %19 = vector.load %arg7[%c0_15, %c0_16] : memref<1x1xf32, #tpu.memory_space<vmem>>, vector<1x1xf32>
    %20 = vector.broadcast %19 : vector<1x1xf32> to vector<1x8xf32>
    %21 = arith.addf %18, %20 : vector<1x8xf32>
    %c0_17 = arith.constant 0 : index
    %c0_18 = arith.constant 0 : index
    %22 = vector.load %arg8[%c0_17, %c0_18] : memref<1x8xf32, #tpu.memory_space<vmem>>, vector<1x8xf32>
    tpu.vector_store %arg8[%c0_17, %c0_18], %21 {strides = array<i32>} : memref<1x8xf32, #tpu.memory_space<vmem>>, vector<1x8xf32>,
    return
  }
  func.func @transform_0(%arg0: i32) -> (i32, i32) {
    %c0_i32 = arith.constant 0 : i32
    %c0_i32_0 = arith.constant 0 : i32
    return %c0_i32, %arg0 : i32, i32
  }
  func.func @transform_1(%arg0: i32) -> (i32, i32) {
    %c0_i32 = arith.constant 0 : i32
    %c0_i32_0 = arith.constant 0 : i32
    %c0_i32_1 = arith.constant 0 : i32
    return %c0_i32, %c0_i32_0 : i32, i32
  }
  func.func @transform_2(%arg0: i32) -> (i32, i32) {
    %c0_i32 = arith.constant 0 : i32
    %c0_i32_0 = arith.constant 0 : i32
    %c0_i32_1 = arith.constant 0 : i32
    return %c0_i32, %c0_i32_0 : i32, i32
  }
  func.func @transform_3(%arg0: i32) -> (i32, i32) {
    %c0_i32 = arith.constant 0 : i32
    %c0_i32_0 = arith.constant 0 : i32
    %c0_i32_1 = arith.constant 0 : i32
    return %c0_i32, %c0_i32_0 : i32, i32
  }
  func.func @transform_4(%arg0: i32) -> (i32, i32) {
    %c0_i32 = arith.constant 0 : i32
    %c0_i32_0 = arith.constant 0 : i32
    %c0_i32_1 = arith.constant 0 : i32
    return %c0_i32, %c0_i32_0 : i32, i32
  }
  func.func @transform_5(%arg0: i32) -> (i32, i32) {
    %c0_i32 = arith.constant 0 : i32
    %c0_i32_0 = arith.constant 0 : i32
    %c0_i32_1 = arith.constant 0 : i32
    return %c0_i32, %c0_i32_0 : i32, i32
  }
  func.func @transform_6(%arg0: i32) -> (i32, i32) {
    %c0_i32 = arith.constant 0 : i32
    %c0_i32_0 = arith.constant 0 : i32
    %c0_i32_1 = arith.constant 0 : i32
    return %c0_i32, %c0_i32_0 : i32, i32
  }
  func.func @transform_7(%arg0: i32) -> (i32, i32) {
    %c0_i32 = arith.constant 0 : i32
    %c0_i32_0 = arith.constant 0 : i32
    return %c0_i32, %arg0 : i32, i32
  }
}

</mosaic_0001>

<llo_original>
// kernel: neural_net_forward.1
$region0: #{neural_net_forward.1}
  #allocation0 [shape = 'u32[]', space=smem, size = 0x4, offset = 0x4, fixed_abs, tag = 'smem constant byte address 0x4 - core index']
  #allocation1 [shape = 'u32[144,128]{1,0:T(1,128)}', space=vmem, size = 0x12000, scoped, tag = 'internal scratch']
  #allocation2 [shape = 'f32[1,1]{1,0:T(1,128)S(1)}', space=vmem, size = 0x200, scoped, tag = 'scoped memory for neural_net_forward.1']
  %s0 = inlined_call_operand.vmem [shape: bf16[32,8], index: 0, kind: input, shape index: {}]
  %s1 = inlined_call_operand.vmem [shape: bf16[64,32], index: 1, kind: input, shape index: {}]
  %s2 = inlined_call_operand.vmem [shape: f32[64,1], index: 2, kind: input, shape index: {}]
  %s3 = inlined_call_operand.vmem [shape: bf16[32,64], index: 3, kind: input, shape index: {}]
  %s4 = inlined_call_operand.vmem [shape: f32[32,1], index: 4, kind: input, shape index: {}]
  %s5 = inlined_call_operand.vmem [shape: bf16[1,32], index: 5, kind: input, shape index: {}]
  %s6 = inlined_call_operand.<no memory space> [shape: f32[1,1], index: 6, kind: input, shape index: {}]
  %s7 = inlined_call_operand.hbm [shape: f32[1,8], index: 7, kind: output, shape index: {}]
  %s8 = sld [smem:[#allocation0]]
  $region38: #{neural_net_forward.1} parent=0
    _
  %s10 = ssub.s32 1, %s8
  %s11 = scalar_select 0, %s10, %s8
  %v12 = vstv %s6
  %13 = vst [vmem:[#allocation2] sm:$0x1] %v12
  $region1: #{neural_net_forward.1} parent=0
    #allocation3 [shape = 'u8[512]{0}', space=vmem, size = 0x400, scoped, tag = 'output window, operand 0, single buffered']
    #allocation4 [shape = 's32[1]{0}', space=sflag, size = 0x4, scoped, tag = 'scoped memory for neural_net_forward.1']
    %14 = vsyncpa [#allocation4], 0
    // Predicated region
    $region2: #{neural_net_forward.1} parent=1 // pred_check
      _
    $region3: #{neural_net_forward.1} parent=1 // pred_check_branch
      %16 = sbr.rel (0) target = $region5
    $region4: #{neural_net_forward.1} parent=1 // pred_region
      _
    $region5: #{neural_net_forward.1} parent=1 // pred_fallthru
      _
    // Predicated region
    $region6: #{neural_net_forward.1} parent=1 // pred_check
      _
    $region7: #{neural_net_forward.1} parent=1 // pred_check_branch
      %18 = sbr.rel (0) target = $region9
    $region8: #{neural_net_forward.1} parent=1 // pred_region
      _
    $region9: #{neural_net_forward.1} parent=1 // pred_fallthru
      _
    // Predicated region
    $region10: #{neural_net_forward.1} parent=1 // pred_check
      _
    $region11: #{neural_net_forward.1} parent=1 // pred_check_branch
      %20 = sbr.rel (0) target = $region13
    $region12: #{neural_net_forward.1} parent=1 // pred_region
      _
    $region13: #{neural_net_forward.1} parent=1 // pred_fallthru
      _
    // Predicated region
    $region14: #{neural_net_forward.1} parent=1 // pred_check
      _
    $region15: #{neural_net_forward.1} parent=1 // pred_check_branch
      %22 = sbr.rel (0) target = $region17
    $region16: #{neural_net_forward.1} parent=1 // pred_region
      _
    $region17: #{neural_net_forward.1} parent=1 // pred_fallthru
      _
    // Predicated region
    $region18: #{neural_net_forward.1} parent=1 // pred_check
      _
    $region19: #{neural_net_forward.1} parent=1 // pred_check_branch
      %24 = sbr.rel (0) target = $region21
    $region20: #{neural_net_forward.1} parent=1 // pred_region
      _
    $region21: #{neural_net_forward.1} parent=1 // pred_fallthru
      _
    // Predicated region
    $region22: #{neural_net_forward.1} parent=1 // pred_check
      _
    $region23: #{neural_net_forward.1} parent=1 // pred_check_branch
      %26 = sbr.rel (0) target = $region25
    $region24: #{neural_net_forward.1} parent=1 // pred_region
      _
    $region25: #{neural_net_forward.1} parent=1 // pred_fallthru
      _
    // Predicated region
    $region26: #{neural_net_forward.1} parent=1 // pred_check
      _
    $region27: #{neural_net_forward.1} parent=1 // pred_check_branch
      %28 = sbr.rel (0) target = $region29
    $region28: #{neural_net_forward.1} parent=1 // pred_region
      _
    $region29: #{neural_net_forward.1} parent=1 // pred_fallthru
      _
    %v30 = vld [vmem:[%s1] sm:$0xf]
    %v31 = vld [vmem:[%s1 + $0x4] sm:$0xf]
    %v32 = vld [vmem:[%s1 + $0x8] sm:$0xf]
    %v33 = vld [vmem:[%s1 + $0xc] sm:$0xf]
    %v34 = vld [vmem:[%s1 + $0x10] sm:$0xf]
    %v35 = vld [vmem:[%s1 + $0x14] sm:$0xf]
    %v36 = vld [vmem:[%s1 + $0x18] sm:$0xf]
    %v37 = vld [vmem:[%s1 + $0x1c] sm:$0xf]
    %v38 = vld [vmem:[%s0] sm:$0xf]
    %v39 = vld [vmem:[%s0 + $0x4] sm:$0xf]
    %v40 = vld [vmem:[%s0 + $0x8] sm:$0xf]
    %v41 = vld [vmem:[%s0 + $0xc] sm:$0xf]
    %v42 = vld [vmem:[%s2] sm:$0xff]
    %v43 = vld [vmem:[%s2 + $0x8] sm:$0xff]
    %v44 = vld [vmem:[%s2 + $0x10] sm:$0xff]
    %v45 = vld [vmem:[%s2 + $0x18] sm:$0xff]
    %v46 = vld [vmem:[%s2 + $0x20] sm:$0xff]
    %v47 = vld [vmem:[%s2 + $0x28] sm:$0xff]
    %v48 = vld [vmem:[%s2 + $0x30] sm:$0xff]
    %v49 = vld [vmem:[%s2 + $0x38] sm:$0xff]
    %51 = vset.pattern.permute.xlu0 0
    %52 = vperm.xlu0 %51, %v42
    %v53 = vpop.permute.xlu0 %52
    %56 = vset.pattern.permute.xlu0 0
    %57 = vperm.xlu0 %56, %v43
    %v58 = vpop.permute.xlu0 %57
    %61 = vset.pattern.permute.xlu0 0
    %62 = vperm.xlu0 %61, %v44
    %v63 = vpop.permute.xlu0 %62
    %66 = vset.pattern.permute.xlu0 0
    %67 = vperm.xlu0 %66, %v45
    %v68 = vpop.permute.xlu0 %67
    %71 = vset.pattern.permute.xlu0 0
    %72 = vperm.xlu0 %71, %v46
    %v73 = vpop.permute.xlu0 %72
    %76 = vset.pattern.permute.xlu0 0
    %77 = vperm.xlu0 %76, %v47
    %v78 = vpop.permute.xlu0 %77
    %81 = vset.pattern.permute.xlu0 0
    %82 = vperm.xlu0 %81, %v48
    %v83 = vpop.permute.xlu0 %82
    %86 = vset.pattern.permute.xlu0 0
    %87 = vperm.xlu0 %86, %v49
    %v88 = vpop.permute.xlu0 %87
    %v98 = vunpack.c.l.b16 %v30
    %v99 = vunpack.c.l.b16 %v31
    %v100 = vunpack.c.l.b16 %v32
    %v101 = vunpack.c.l.b16 %v33
    %v102 = vunpack.c.l.b16 %v34
    %v103 = vunpack.c.l.b16 %v35
    %v104 = vunpack.c.l.b16 %v36
    %v105 = vunpack.c.l.b16 %v37
    %v106 = vpack.c.b16 %v99, %v98
    %v107 = vpack.c.b16 %v101, %v100
    %v108 = vpack.c.b16 %v103, %v102
    %v109 = vpack.c.b16 %v105, %v104
    %v114 = vunpack.c.l.b16 %v38
    %v115 = vunpack.c.l.b16 %v39
    %v116 = vunpack.c.l.b16 %v40
    %v117 = vunpack.c.l.b16 %v41
    %v118 = vpack.c.b16 %v115, %v114
    %v119 = vpack.c.b16 %v117, %v116
    %vm122 = vcmask 261120
    %v124 = vsel %vm122, %v106, 0
    %v127 = vsel %vm122, %v107, 0
    %v130 = vsel %vm122, %v108, 0
    %v133 = vsel %vm122, %v109, 0
    %135 = vmatprep.subr.bf16.mxu0 0
    %136 = vmatpush1.bf16.msra.mxu0 0
    %137 = vmatprep.subr.bf16.mxu0 0
    %138 = vmatpush1.bf16.msra.mxu0 0
    %139 = vmatprep.subr.bf16.mxu0 0
    %140 = vmatpush1.bf16.msra.mxu0 0
    %141 = vmatprep.subr.bf16.mxu0 0
    %142 = vmatpush1.bf16.msra.mxu0 0
    %143 = vmatprep.subr.bf16.mxu0 0
    %144 = vmatpush1.bf16.msra.mxu0 0
    %145 = vmatprep.subr.bf16.mxu0 0
    %146 = vmatpush1.bf16.msra.mxu0 0
    %147 = vmatprep.subr.bf16.mxu0 0
    %148 = vmatpush1.bf16.msra.mxu0 %v119
    %149 = vmatprep.subr.bf16.mxu0 0
    %150 = vmatpush1.bf16.msra.mxu0 %v118
    %151 = vmatprep.subr.bf16.mxu0 0
    %152 = vmatpush2.bf16.msra.mxu0 0
    %153 = vmatprep.subr.bf16.mxu0 0
    %154 = vmatpush2.bf16.msra.mxu0 0
    %155 = vmatprep.subr.bf16.mxu0 0
    %156 = vmatpush2.bf16.msra.mxu0 0
    %157 = vmatprep.subr.bf16.mxu0 0
    %158 = vmatpush2.bf16.msra.mxu0 0
    %159 = vmatprep.subr.bf16.mxu0 0
    %160 = vmatpush2.bf16.msra.mxu0 0
    %161 = vmatprep.subr.bf16.mxu0 0
    %162 = vmatpush2.bf16.msra.mxu0 0
    %163 = vmatprep.subr.bf16.mxu0 0
    %164 = vmatpush2.bf16.msra.mxu0 0
    %165 = vmatprep.subr.bf16.mxu0 0
    %166 = vmatpush2.bf16.msra.mxu0 0
    %167 = vmatprep.mubr.bf16.mxu0 0
    %168 = vmatmul.mubr.bf16.gmra.mxu0 %v124
    %v169 = vpop.f32.mrf.mxu0
    %v170 = vadd.f32 %v53, %v169
    %v171 = vpop.f32.mrf.mxu0
    %v172 = vpop.f32.mrf.mxu0
    %v173 = vadd.f32 %v58, %v172
    %v174 = vpop.f32.mrf.mxu0
    %175 = vmatprep.mubr.bf16.mxu0 0
    %176 = vmatmul.mubr.bf16.gmra.mxu0 %v127
    %v177 = vpop.f32.mrf.mxu0
    %v178 = vadd.f32 %v63, %v177
    %v179 = vpop.f32.mrf.mxu0
    %v180 = vpop.f32.mrf.mxu0
    %v181 = vadd.f32 %v68, %v180
    %v182 = vpop.f32.mrf.mxu0
    %183 = vmatprep.mubr.bf16.mxu0 0
    %184 = vmatmul.mubr.bf16.gmra.mxu0 %v130
    %v185 = vpop.f32.mrf.mxu0
    %v186 = vadd.f32 %v73, %v185
    %v187 = vpop.f32.mrf.mxu0
    %v188 = vpop.f32.mrf.mxu0
    %v189 = vadd.f32 %v78, %v188
    %v190 = vpop.f32.mrf.mxu0
    %191 = vmatprep.mubr.bf16.mxu0 0
    %192 = vmatmul.mubr.bf16.gmra.mxu0 %v133
    %v193 = vpop.f32.mrf.mxu0
    %v194 = vadd.f32 %v83, %v193
    %v195 = vpop.f32.mrf.mxu0
    %v196 = vpop.f32.mrf.mxu0
    %v197 = vadd.f32 %v88, %v196
    %v198 = vpop.f32.mrf.mxu0
    %199 = vdwg.mxu0
    %v200 = vmax.f32 %v170, 0.0
    %v201 = vmax.f32 %v173, 0.0
    %v202 = vmax.f32 %v178, 0.0
    %v203 = vmax.f32 %v181, 0.0
    %v204 = vmax.f32 %v186, 0.0
    %v205 = vmax.f32 %v189, 0.0
    %v206 = vmax.f32 %v194, 0.0
    %v207 = vmax.f32 %v197, 0.0
    %v208 = vld [vmem:[%s3] sm:$0xf]
    %v209 = vld [vmem:[%s3 + $0x4] sm:$0xf]
    %v210 = vld [vmem:[%s3 + $0x8] sm:$0xf]
    %v211 = vld [vmem:[%s3 + $0xc] sm:$0xf]
    %v212 = vpack.c.bf16 %v201, %v200
    %v213 = vpack.c.bf16 %v203, %v202
    %v214 = vpack.c.bf16 %v205, %v204
    %v215 = vpack.c.bf16 %v207, %v206
    %v216 = vld [vmem:[%s4] sm:$0xff]
    %v217 = vld [vmem:[%s4 + $0x8] sm:$0xff]
    %v218 = vld [vmem:[%s4 + $0x10] sm:$0xff]
    %v219 = vld [vmem:[%s4 + $0x18] sm:$0xff]
    %221 = vset.pattern.permute.xlu0 0
    %222 = vperm.xlu0 %221, %v216
    %v223 = vpop.permute.xlu0 %222
    %226 = vset.pattern.permute.xlu0 0
    %227 = vperm.xlu0 %226, %v217
    %v228 = vpop.permute.xlu0 %227
    %231 = vset.pattern.permute.xlu0 0
    %232 = vperm.xlu0 %231, %v218
    %v233 = vpop.permute.xlu0 %232
    %236 = vset.pattern.permute.xlu0 0
    %237 = vperm.xlu0 %236, %v219
    %v238 = vpop.permute.xlu0 %237
    %v244 = vunpack.c.l.b16 %v208
    %v245 = vunpack.c.l.b16 %v209
    %v246 = vunpack.c.l.b16 %v210
    %v247 = vunpack.c.l.b16 %v211
    %v248 = vpack.c.b16 %v245, %v244
    %v249 = vpack.c.b16 %v247, %v246
    %vm250 = vcmask 523264
    %v252 = vsel %vm250, %v248, 0
    %v255 = vsel %vm250, %v249, 0
    %257 = vmatprep.subr.bf16.mxu0 0
    %258 = vmatpush1.bf16.msra.mxu0 0
    %259 = vmatprep.subr.bf16.mxu0 0
    %260 = vmatpush1.bf16.msra.mxu0 0
    %261 = vmatprep.subr.bf16.mxu0 0
    %262 = vmatpush1.bf16.msra.mxu0 0
    %263 = vmatprep.subr.bf16.mxu0 0
    %264 = vmatpush1.bf16.msra.mxu0 0
    %265 = vmatprep.subr.bf16.mxu0 0
    %266 = vmatpush1.bf16.msra.mxu0 %v215
    %267 = vmatprep.subr.bf16.mxu0 0
    %268 = vmatpush1.bf16.msra.mxu0 %v214
    %269 = vmatprep.subr.bf16.mxu0 0
    %270 = vmatpush1.bf16.msra.mxu0 %v213
    %271 = vmatprep.subr.bf16.mxu0 0
    %272 = vmatpush1.bf16.msra.mxu0 %v212
    %273 = vmatprep.subr.bf16.mxu0 0
    %274 = vmatpush2.bf16.msra.mxu0 0
    %275 = vmatprep.subr.bf16.mxu0 0
    %276 = vmatpush2.bf16.msra.mxu0 0
    %277 = vmatprep.subr.bf16.mxu0 0
    %278 = vmatpush2.bf16.msra.mxu0 0
    %279 = vmatprep.subr.bf16.mxu0 0
    %280 = vmatpush2.bf16.msra.mxu0 0
    %281 = vmatprep.subr.bf16.mxu0 0
    %282 = vmatpush2.bf16.msra.mxu0 0
    %283 = vmatprep.subr.bf16.mxu0 0
    %284 = vmatpush2.bf16.msra.mxu0 0
    %285 = vmatprep.subr.bf16.mxu0 0
    %286 = vmatpush2.bf16.msra.mxu0 0
    %287 = vmatprep.subr.bf16.mxu0 0
    %288 = vmatpush2.bf16.msra.mxu0 0
    %289 = vmatprep.mubr.bf16.mxu0 0
    %290 = vmatmul.mubr.bf16.gmra.mxu0 %v252
    %v291 = vpop.f32.mrf.mxu0
    %v292 = vadd.f32 %v223, %v291
    %v293 = vpop.f32.mrf.mxu0
    %v294 = vpop.f32.mrf.mxu0
    %v295 = vadd.f32 %v228, %v294
    %v296 = vpop.f32.mrf.mxu0
    %297 = vmatprep.mubr.bf16.mxu0 0
    %298 = vmatmul.mubr.bf16.gmra.mxu0 %v255
    %v299 = vpop.f32.mrf.mxu0
    %v300 = vadd.f32 %v233, %v299
    %v301 = vpop.f32.mrf.mxu0
    %v302 = vpop.f32.mrf.mxu0
    %v303 = vadd.f32 %v238, %v302
    %v304 = vpop.f32.mrf.mxu0
    %305 = vdwg.mxu0
    %v306 = vmax.f32 %v292, 0.0
    %v307 = vmax.f32 %v295, 0.0
    %v308 = vmax.f32 %v300, 0.0
    %v309 = vmax.f32 %v303, 0.0
    %v310 = vld [vmem:[%s5] sm:$0x1]
    %v311 = vpack.c.bf16 %v307, %v306
    %v312 = vpack.c.bf16 %v309, %v308
    %v313 = vld [vmem:[#allocation2] sm:$0x1]
    %315 = vset.pattern.permute.xlu0 0
    %316 = vperm.xlu0 %315, %v313
    %v317 = vpop.permute.xlu0 %316
    %v319 = vlaneseq
    %v320 = vshrl.u32 %v319, 7
    %v321 = vsub.s32 0, %v320
    %v322 = vrot.slane %v317, %v321
    %v324 = vsel %vm122, %v310, 0
    %326 = vmatprep.subr.bf16.mxu0 0
    %327 = vmatpush1.bf16.msra.mxu0 0
    %328 = vmatprep.subr.bf16.mxu0 0
    %329 = vmatpush1.bf16.msra.mxu0 0
    %330 = vmatprep.subr.bf16.mxu0 0
    %331 = vmatpush1.bf16.msra.mxu0 0
    %332 = vmatprep.subr.bf16.mxu0 0
    %333 = vmatpush1.bf16.msra.mxu0 0
    %334 = vmatprep.subr.bf16.mxu0 0
    %335 = vmatpush1.bf16.msra.mxu0 0
    %336 = vmatprep.subr.bf16.mxu0 0
    %337 = vmatpush1.bf16.msra.mxu0 0
    %338 = vmatprep.subr.bf16.mxu0 0
    %339 = vmatpush1.bf16.msra.mxu0 %v312
    %340 = vmatprep.subr.bf16.mxu0 0
    %341 = vmatpush1.bf16.msra.mxu0 %v311
    %342 = vmatprep.subr.bf16.mxu0 0
    %343 = vmatpush2.bf16.msra.mxu0 0
    %344 = vmatprep.subr.bf16.mxu0 0
    %345 = vmatpush2.bf16.msra.mxu0 0
    %346 = vmatprep.subr.bf16.mxu0 0
    %347 = vmatpush2.bf16.msra.mxu0 0
    %348 = vmatprep.subr.bf16.mxu0 0
    %349 = vmatpush2.bf16.msra.mxu0 0
    %350 = vmatprep.subr.bf16.mxu0 0
    %351 = vmatpush2.bf16.msra.mxu0 0
    %352 = vmatprep.subr.bf16.mxu0 0
    %353 = vmatpush2.bf16.msra.mxu0 0
    %354 = vmatprep.subr.bf16.mxu0 0
    %355 = vmatpush2.bf16.msra.mxu0 0
    %356 = vmatprep.subr.bf16.mxu0 0
    %357 = vmatpush2.bf16.msra.mxu0 0
    %358 = vmatprep.mubr.bf16.mxu0 0
    %359 = vmatmul.mubr.bf16.gmra.mxu0 %v324
    %v360 = vpop.f32.mrf.mxu0
    %v361 = vadd.f32 %v322, %v360
    %v362 = vpop.f32.mrf.mxu0
    %v363 = vpop.f32.mrf.mxu0
    %v364 = vpop.f32.mrf.mxu0
    %365 = vdwg.mxu0
    %vm366 = vcmask 57344
    %367 = vst.msk [vmem:[#allocation3] sm:$0x1] %vm366, %v361
    // Predicated region
    $region30: #{neural_net_forward.1} parent=1 // pred_check
      _
    $region31: #{neural_net_forward.1} parent=1 // pred_check_branch
      %369 = sbr.rel (0) target = $region33
    $region32: #{neural_net_forward.1} parent=1 // pred_region
      %s371 = ssub.s32 16, 16
      %372 = vsyncadd [#allocation4], %s371
      %s374 = sshll.u32 [#allocation3], 4
      %s375 = int_to_ptr.vmem [resolvable:$true] %s374
      %377 = dma.vmem_to_hbm [thread:$0]  %s375, 16, %s7, [#allocation4]
    $region33: #{neural_net_forward.1} parent=1 // pred_fallthru
      _
    // Predicated region
    $region34: #{neural_net_forward.1} parent=1 // pred_check
      _
    $region35: #{neural_net_forward.1} parent=1 // pred_check_branch
      %379 = sbr.rel (0) target = $region37
    $region36: #{neural_net_forward.1} parent=1 // pred_region
      %380 = dma.done [#allocation4], 16
    $region37: #{neural_net_forward.1} parent=1 // pred_fallthru
      _
    %381 = vsyncpa [#allocation4], 1

</llo_original>
